<compile_context>
chip_gen: v7x
topology: tpu7x:2x2x1
jax: 0.10.0
libtpu: 0.0.40
codegen_flags: <defaults>
</compile_context>

<pallas_src>
import functools
import math

import jax
import jax.numpy as jnp
from jax.experimental import pallas as pl
from jax.experimental.pallas import tpu as pltpu

G = 0.8  # module-level g from the reference script

_F32_BYTES = 4
_VMEM_BUDGET = 12 * 1024 * 1024  # fits v5e's 16 MiB default scoped VMEM


def _kernel_f32_out(x_ref, y_ref, w_ref, o_ref):
    """Accumulate the y @ W.T contraction directly into the f32 output block."""
    k = pl.program_id(2)

    # y[tm, tk] · W[tn, tk] contracted on dim 1 -> [tm, tn] on the MXU
    # (native transposed-RHS path; no XLU transpose of the W tile).
    partial = jax.lax.dot_general(
        y_ref[...],
        w_ref[...],
        dimension_numbers=(((1,), (1,)), ((), ())),
        preferred_element_type=jnp.float32,
    )

    @pl.when(k == 0)
    def _init():
        o_ref[...] = partial

    @pl.when(k > 0)
    def _accumulate():
        o_ref[...] += partial

    @pl.when(k == pl.num_programs(2) - 1)
    def _finalize():
        # Convex blend applied once, after the full contraction.
        o_ref[...] = G * x_ref[...] + (1.0 - G) * o_ref[...]


def _kernel_acc_out(x_ref, y_ref, w_ref, o_ref, acc_ref):
    """Variant with an f32 scratch accumulator for narrow output dtypes."""
    k = pl.program_id(2)

    @pl.when(k == 0)
    def _init():
        acc_ref[...] = jnp.zeros_like(acc_ref)

    acc_ref[...] += jax.lax.dot_general(
        y_ref[...],
        w_ref[...],
        dimension_numbers=(((1,), (1,)), ((), ())),
        preferred_element_type=jnp.float32,
    )

    @pl.when(k == pl.num_programs(2) - 1)
    def _finalize():
        z = G * x_ref[...].astype(jnp.float32) + (1.0 - G) * acc_ref[...]
        o_ref[...] = z.astype(o_ref.dtype)


def _round_up(v, m):
    return ((v + m - 1) // m) * m


def _pick_tile(dim, candidates):
    for c in candidates:
        if dim % c == 0:
            return c
    return candidates[-1]


def _footprint_bytes(tm, tn, tk, use_acc):
    """Conservative f32 double-buffered VMEM footprint for one grid step."""
    fb = 2 * tm * tn * _F32_BYTES   # x (double-buffered)
    fb += 2 * tm * tk * _F32_BYTES  # y
    fb += 2 * tn * tk * _F32_BYTES  # W
    fb += 2 * tm * tn * _F32_BYTES  # output
    if use_acc:
        fb += tm * tn * _F32_BYTES  # scratch accumulator
    return fb


def _choose_tiles(B, Dp, use_acc):
    # Output-feature tile: lane-dense multiple of 128 (128 already ideal for
    # v5e's 4x128^2 MXU; 256/512 also fill v6e/v7x's 256-wide MXU).
    tn = _pick_tile(Dp, (512, 256, 128))

    # Batch tile: single tile when small, near-equal ~512-row tiles otherwise
    # (minimizes batch padding vs. blindly rounding up to 512).
    if B <= 512:
        tm = _round_up(B, 8)
    else:
        n_bt = -(-B // 512)
        tm = _round_up(-(-B // n_bt), 8)

    # Contraction tile: prefer a single K step (tk == Dp) so each W strip is
    # streamed from HBM exactly once; back off only if it breaks the budget.
    tk = None
    for cand in (Dp, 2048, 1024, 512, 256, 128):
        if cand <= Dp and Dp % cand == 0 and \
                _footprint_bytes(tm, tn, cand, use_acc) <= _VMEM_BUDGET:
            tk = cand
            break
    if tk is None:
        tk = 128

    # Last-resort shrink of the batch tile to respect the VMEM budget.
    while _footprint_bytes(tm, tn, tk, use_acc) > _VMEM_BUDGET and tm > 8:
        tm = max(8, _round_up(tm // 2, 8))

    return tm, tn, tk


@functools.partial(jax.jit, static_argnames=("use_bf16_matmul",))
def simplex_dense(x, y, w, *, use_bf16_matmul=False):
    """x: [B, D], y: [B, D], w: [D, D] (PyTorch Linear weight layout [out, in])."""
    B, D = x.shape
    assert y.shape == (B, D) and w.shape == (D, D)

    out_dtype = x.dtype
    use_acc = out_dtype != jnp.float32

    Dp = _round_up(D, 128)
    tm, tn, tk = _choose_tiles(B, Dp, use_acc)
    Bp = _round_up(B, tm)

    pad_b, pad_d = Bp - B, Dp - D
    xp = jnp.pad(x, ((0, pad_b), (0, pad_d))) if (pad_b or pad_d) else x
    yp = jnp.pad(y, ((0, pad_b), (0, pad_d))) if (pad_b or pad_d) else y
    wp = jnp.pad(w, ((0, pad_d), (0, pad_d))) if pad_d else w

    if use_bf16_matmul:
        # v6e/v7x: bf16 MXU operands (f32 accumulation preserved in-kernel);
        # also halves W HBM traffic.  Gated off by default (precision change).
        yp = yp.astype(jnp.bfloat16)
        wp = wp.astype(jnp.bfloat16)

    nj, ni, nk = Dp // tn, Bp // tm, Dp // tk
    grid = (nj, ni, nk)  # (j: N tiles, i: batch tiles, k: K tiles) — reduction last

    # v7x megacore: when W spans >1 N tile, shard only along j so the two
    # TensorCores partition W (no duplicated W HBM reads).  Single-TC chips
    # are insensitive to this choice.
    if nj >= 2:
        dims = ("parallel", "arbitrary", "arbitrary")
    else:
        dims = ("parallel", "parallel", "arbitrary")

    in_specs = [
        pl.BlockSpec((tm, tn), lambda j, i, k: (i, j)),  # x tile (constant over k)
        pl.BlockSpec((tm, tk), lambda j, i, k: (i, k)),  # y tile
        pl.BlockSpec((tn, tk), lambda j, i, k: (j, k)),  # W tile (reused across i when nk == 1)
    ]
    out_spec = pl.BlockSpec((tm, tn), lambda j, i, k: (i, j))

    if use_acc:
        kernel = _kernel_acc_out
        scratch_shapes = [pltpu.VMEM((tm, tn), jnp.float32)]
    else:
        kernel = _kernel_f32_out
        scratch_shapes = []

    out = pl.pallas_call(
        kernel,
        out_shape=jax.ShapeDtypeStruct((Bp, Dp), out_dtype),
        grid=grid,
        in_specs=in_specs,
        out_specs=out_spec,
        scratch_shapes=scratch_shapes,
        compiler_params=pltpu.CompilerParams(dimension_semantics=dims),
    )(xp, yp, wp)

    if pad_b or pad_d:
        out = out[:B, :D]
    return out


def xavier_uniform(key, fan_out, fan_in, dtype=jnp.float32):
    # Matches torch.nn.init.xavier_uniform_ for a [out, in] weight.
    bound = math.sqrt(6.0 / (fan_in + fan_out))
    return jax.random.uniform(
        key, (fan_out, fan_in), dtype=dtype, minval=-bound, maxval=bound
    )


if __name__ == "__main__":
    batch = 8
    emb_out_size = 32

    key = jax.random.PRNGKey(0)
    kx, ky, kw = jax.random.split(key, 3)

    x = jax.random.normal(kx, (batch, emb_out_size), dtype=jnp.float32)
    y = jax.random.normal(ky, (batch, emb_out_size), dtype=jnp.float32)
    w = xavier_uniform(kw, emb_out_size, emb_out_size)

    z = simplex_dense(x, y, w)
    jax.block_until_ready(z)

    # Reference check in plain JAX (same math as the PyTorch module).
    z_ref = G * x + (1.0 - G) * (y @ w.T)
    assert z.shape == z_ref.shape and z.dtype == z_ref.dtype
    assert jnp.allclose(z, z_ref, atol=1e-5, rtol=1e-5)

    print("KERNEL_OK")
</pallas_src>

<mosaic_0001>
module attributes {stable_mosaic.version = 11 : i64} {
  func.func @_kernel_f32_out(%arg0: i32, %arg1: i32, %arg2: i32, %arg3: memref<8x128xf32, #tpu.memory_space<vmem>>, %arg4: memref<8x128xf32, #tpu.memory_space<vmem>>, %arg5: memref<128x128xf32, #tpu.memory_space<vmem>>, %arg6: memref<8x128xf32, #tpu.memory_space<vmem>>) attributes {dimension_semantics = [#tpu.dimension_semantics<parallel>, #tpu.dimension_semantics<parallel>, #tpu.dimension_semantics<arbitrary>], iteration_bounds = array<i64: 1, 1, 1>, scalar_prefetch = 0 : i64, scratch_operands = 0 : i64, tpu.core_type = #tpu.core_type<tc>, window_params = [{transform_indices = @transform_0, window_bounds = array<i64: 8, 128>}, {transform_indices = @transform_1, window_bounds = array<i64: 8, 128>}, {transform_indices = @transform_2, window_bounds = array<i64: 128, 128>}, {transform_indices = @transform_3, window_bounds = array<i64: 8, 128>}]} {
    %c0 = arith.constant 0 : index
    %c0_0 = arith.constant 0 : index
    %0 = vector.load %arg4[%c0, %c0_0] : memref<8x128xf32, #tpu.memory_space<vmem>>, vector<8x128xf32>
    %c0_1 = arith.constant 0 : index
    %c0_2 = arith.constant 0 : index
    %1 = vector.load %arg5[%c0_1, %c0_2] : memref<128x128xf32, #tpu.memory_space<vmem>>, vector<128x128xf32>
    %cst = arith.constant dense<0.000000e+00> : vector<8x128xf32>
    %2 = tpu.matmul %0, %1, %cst {dimension_numbers = #tpu.dot_dimension_numbers<[1], [1], [0], [0], [0, 0, 1, 0], [], []>} : vector<8x128xf32>, vector<128x128xf32>, vector<8x128xf32> -> vector<8x128xf32>
    %c0_i32 = arith.constant 0 : i32
    %3 = arith.cmpi eq, %arg2, %c0_i32 : i32
    %4 = arith.extui %3 : i1 to i32
    %c0_i32_3 = arith.constant 0 : i32
    %5 = arith.cmpi ne, %4, %c0_i32_3 : i32
    scf.if %5 {
      %c0_8 = arith.constant 0 : index
      %c0_9 = arith.constant 0 : index
      %12 = vector.load %arg6[%c0_8, %c0_9] : memref<8x128xf32, #tpu.memory_space<vmem>>, vector<8x128xf32>
      tpu.vector_store %arg6[%c0_8, %c0_9], %2 {strides = array<i32>} : memref<8x128xf32, #tpu.memory_space<vmem>>, vector<8x128xf32>,
    } else {
    }
    %c0_i32_4 = arith.constant 0 : i32
    %6 = arith.cmpi sgt, %arg2, %c0_i32_4 : i32
    %7 = arith.extui %6 : i1 to i32
    %c0_i32_5 = arith.constant 0 : i32
    %8 = arith.cmpi ne, %7, %c0_i32_5 : i32
    scf.if %8 {
      %c0_8 = arith.constant 0 : index
      %c0_9 = arith.constant 0 : index
      %12 = vector.load %arg6[%c0_8, %c0_9] : memref<8x128xf32, #tpu.memory_space<vmem>>, vector<8x128xf32>
      %13 = arith.addf %12, %2 : vector<8x128xf32>
      %c0_10 = arith.constant 0 : index
      %c0_11 = arith.constant 0 : index
      %14 = vector.load %arg6[%c0_10, %c0_11] : memref<8x128xf32, #tpu.memory_space<vmem>>, vector<8x128xf32>
      tpu.vector_store %arg6[%c0_10, %c0_11], %13 {strides = array<i32>} : memref<8x128xf32, #tpu.memory_space<vmem>>, vector<8x128xf32>,
    } else {
    }
    %c0_i32_6 = arith.constant 0 : i32
    %9 = arith.cmpi eq, %arg2, %c0_i32_6 : i32
    %10 = arith.extui %9 : i1 to i32
    %c0_i32_7 = arith.constant 0 : i32
    %11 = arith.cmpi ne, %10, %c0_i32_7 : i32
    scf.if %11 {
      %c0_8 = arith.constant 0 : index
      %c0_9 = arith.constant 0 : index
      %12 = vector.load %arg3[%c0_8, %c0_9] : memref<8x128xf32, #tpu.memory_space<vmem>>, vector<8x128xf32>
      %cst_10 = arith.constant 8.000000e-01 : f32
      %13 = vector.broadcast %cst_10 : f32 to vector<8x128xf32>
      %14 = arith.mulf %13, %12 : vector<8x128xf32>
      %c0_11 = arith.constant 0 : index
      %c0_12 = arith.constant 0 : index
      %15 = vector.load %arg6[%c0_11, %c0_12] : memref<8x128xf32, #tpu.memory_space<vmem>>, vector<8x128xf32>
      %cst_13 = arith.constant 2.000000e-01 : f32
      %16 = vector.broadcast %cst_13 : f32 to vector<8x128xf32>
      %17 = arith.mulf %16, %15 : vector<8x128xf32>
      %18 = arith.addf %14, %17 : vector<8x128xf32>
      %c0_14 = arith.constant 0 : index
      %c0_15 = arith.constant 0 : index
      %19 = vector.load %arg6[%c0_14, %c0_15] : memref<8x128xf32, #tpu.memory_space<vmem>>, vector<8x128xf32>
      tpu.vector_store %arg6[%c0_14, %c0_15], %18 {strides = array<i32>} : memref<8x128xf32, #tpu.memory_space<vmem>>, vector<8x128xf32>,
    } else {
    }
    return
  }
  func.func @transform_0(%arg0: i32, %arg1: i32, %arg2: i32) -> (i32, i32) {
    %c0_i32 = arith.constant 0 : i32
    return %arg1, %arg0 : i32, i32
  }
  func.func @transform_1(%arg0: i32, %arg1: i32, %arg2: i32) -> (i32, i32) {
    %c0_i32 = arith.constant 0 : i32
    return %arg1, %arg2 : i32, i32
  }
  func.func @transform_2(%arg0: i32, %arg1: i32, %arg2: i32) -> (i32, i32) {
    %c0_i32 = arith.constant 0 : i32
    return %arg0, %arg2 : i32, i32
  }
  func.func @transform_3(%arg0: i32, %arg1: i32, %arg2: i32) -> (i32, i32) {
    %c0_i32 = arith.constant 0 : i32
    return %arg1, %arg0 : i32, i32
  }
}

</mosaic_0001>

<llo_original>
// kernel: simplex_dense.1
$region0: #{simplex_dense.1}
  #allocation0 [shape = 'u32[]', space=smem, size = 0x4, offset = 0x4, fixed_abs, tag = 'smem constant byte address 0x4 - core index']
  #allocation1 [shape = 'u32[144,128]{1,0:T(1,128)}', space=vmem, size = 0x12000, scoped, tag = 'internal scratch']
  %s0 = inlined_call_operand.vmem [shape: f32[8,128], index: 0, kind: input, shape index: {}]
  %s1 = inlined_call_operand.vmem [shape: f32[8,128], index: 1, kind: input, shape index: {}]
  %s2 = inlined_call_operand.vmem [shape: f32[128,128], index: 2, kind: input, shape index: {}]
  %s3 = inlined_call_operand.hbm [shape: f32[8,128], index: 3, kind: output, shape index: {}]
  %s4 = sld [smem:[#allocation0]]
  $region34: #{simplex_dense.1} parent=0
    _
  %s6 = ssub.s32 1, %s4
  %s7 = scalar_select 0, %s6, %s4
  $region1: #{simplex_dense.1} parent=0
    #allocation2 [shape = 'u8[4096]{0}', space=vmem, size = 0x1000, scoped, tag = 'output window, operand 0, single buffered']
    #allocation3 [shape = 's32[1]{0}', space=sflag, size = 0x4, scoped, tag = 'scoped memory for simplex_dense.1']
    %8 = vsyncpa [#allocation3], 0
    // Predicated region
    $region2: #{simplex_dense.1} parent=1 // pred_check
      _
    $region3: #{simplex_dense.1} parent=1 // pred_check_branch
      %10 = sbr.rel (0) target = $region5
    $region4: #{simplex_dense.1} parent=1 // pred_region
      _
    $region5: #{simplex_dense.1} parent=1 // pred_fallthru
      _
    // Predicated region
    $region6: #{simplex_dense.1} parent=1 // pred_check
      _
    $region7: #{simplex_dense.1} parent=1 // pred_check_branch
      %12 = sbr.rel (0) target = $region9
    $region8: #{simplex_dense.1} parent=1 // pred_region
      _
    $region9: #{simplex_dense.1} parent=1 // pred_fallthru
      _
    // Predicated region
    $region10: #{simplex_dense.1} parent=1 // pred_check
      _
    $region11: #{simplex_dense.1} parent=1 // pred_check_branch
      %14 = sbr.rel (0) target = $region13
    $region12: #{simplex_dense.1} parent=1 // pred_region
      _
    $region13: #{simplex_dense.1} parent=1 // pred_fallthru
      _
    %v15 = vld [vmem:[%s1] sm:$0xff]
    %v16 = vld [vmem:[%s2] sm:$0xff]
    %v17 = vld [vmem:[%s2 + $0x8] sm:$0xff]
    %v18 = vld [vmem:[%s2 + $0x10] sm:$0xff]
    %v19 = vld [vmem:[%s2 + $0x18] sm:$0xff]
    %v20 = vld [vmem:[%s2 + $0x20] sm:$0xff]
    %v21 = vld [vmem:[%s2 + $0x28] sm:$0xff]
    %v22 = vld [vmem:[%s2 + $0x30] sm:$0xff]
    %v23 = vld [vmem:[%s2 + $0x38] sm:$0xff]
    %v24 = vld [vmem:[%s2 + $0x40] sm:$0xff]
    %v25 = vld [vmem:[%s2 + $0x48] sm:$0xff]
    %v26 = vld [vmem:[%s2 + $0x50] sm:$0xff]
    %v27 = vld [vmem:[%s2 + $0x58] sm:$0xff]
    %v28 = vld [vmem:[%s2 + $0x60] sm:$0xff]
    %v29 = vld [vmem:[%s2 + $0x68] sm:$0xff]
    %v30 = vld [vmem:[%s2 + $0x70] sm:$0xff]
    %v31 = vld [vmem:[%s2 + $0x78] sm:$0xff]
    %32 = vmatprep.subr.mxu0 0.0
    %33 = vmatpush1.xpose.msra.mxu0 %v16
    %34 = vmatprep.subr.mxu0 0.0
    %35 = vmatpush1.xpose.msra.mxu0 %v17
    %36 = vmatprep.subr.mxu0 0.0
    %37 = vmatpush1.xpose.msra.mxu0 %v18
    %38 = vmatprep.subr.mxu0 0.0
    %39 = vmatpush1.xpose.msra.mxu0 %v19
    %40 = vmatprep.subr.mxu0 0.0
    %41 = vmatpush1.xpose.msra.mxu0 %v20
    %42 = vmatprep.subr.mxu0 0.0
    %43 = vmatpush1.xpose.msra.mxu0 %v21
    %44 = vmatprep.subr.mxu0 0.0
    %45 = vmatpush1.xpose.msra.mxu0 %v22
    %46 = vmatprep.subr.mxu0 0.0
    %47 = vmatpush1.xpose.msra.mxu0 %v23
    %48 = vmatprep.subr.mxu0 0.0
    %49 = vmatpush1.xpose.msra.mxu0 %v24
    %50 = vmatprep.subr.mxu0 0.0
    %51 = vmatpush1.xpose.msra.mxu0 %v25
    %52 = vmatprep.subr.mxu0 0.0
    %53 = vmatpush1.xpose.msra.mxu0 %v26
    %54 = vmatprep.subr.mxu0 0.0
    %55 = vmatpush1.xpose.msra.mxu0 %v27
    %56 = vmatprep.subr.mxu0 0.0
    %57 = vmatpush1.xpose.msra.mxu0 %v28
    %58 = vmatprep.subr.mxu0 0.0
    %59 = vmatpush1.xpose.msra.mxu0 %v29
    %60 = vmatprep.subr.mxu0 0.0
    %61 = vmatpush1.xpose.msra.mxu0 %v30
    %62 = vmatprep.subr.mxu0 0.0
    %63 = vmatpush1.xpose.msra.mxu0 %v31
    %64 = vmatprep.subr.mxu0 0.0
    %65 = vmatpush1.xpose.msra.mxu0 0.0
    %66 = vmatprep.subr.mxu0 0.0
    %67 = vmatpush1.xpose.msra.mxu0 0.0
    %68 = vmatprep.subr.mxu0 0.0
    %69 = vmatpush1.xpose.msra.mxu0 0.0
    %70 = vmatprep.subr.mxu0 0.0
    %71 = vmatpush1.xpose.msra.mxu0 0.0
    %72 = vmatprep.subr.mxu0 0.0
    %73 = vmatpush1.xpose.msra.mxu0 0.0
    %74 = vmatprep.subr.mxu0 0.0
    %75 = vmatpush1.xpose.msra.mxu0 0.0
    %76 = vmatprep.subr.mxu0 0.0
    %77 = vmatpush1.xpose.msra.mxu0 0.0
    %78 = vmatprep.subr.mxu0 0.0
    %79 = vmatpush1.xpose.msra.mxu0 0.0
    %80 = vmatprep.subr.mxu0 0.0
    %81 = vmatpush1.xpose.msra.mxu0 0.0
    %82 = vmatprep.subr.mxu0 0.0
    %83 = vmatpush1.xpose.msra.mxu0 0.0
    %84 = vmatprep.subr.mxu0 0.0
    %85 = vmatpush1.xpose.msra.mxu0 0.0
    %86 = vmatprep.subr.mxu0 0.0
    %87 = vmatpush1.xpose.msra.mxu0 0.0
    %88 = vmatprep.subr.mxu0 0.0
    %89 = vmatpush1.xpose.msra.mxu0 0.0
    %90 = vmatprep.subr.mxu0 0.0
    %91 = vmatpush1.xpose.msra.mxu0 0.0
    %92 = vmatprep.subr.mxu0 0.0
    %93 = vmatpush1.xpose.msra.mxu0 0.0
    %94 = vmatprep.subr.mxu0 0.0
    %95 = vmatpush1.xpose.msra.mxu0 0.0
    %96 = vmatprep.mubr.f32.mxu0 0.0
    %97 = vmatmul.mubr.f32.gmra.mrb[0].mxu0 %v15
    %v98 = vpop.f32.mrb[0].mxu0
    %v99 = vadd.f32 0.0, %v98
    %v100 = vpop.f32.mrb[0].mxu0
    %101 = vdwg.mxu0
    %p102 = scmp.eq.s32.totalorder 0, 0
    // Predicated region
    $region14: #{simplex_dense.1} parent=1 // pred_check
      %p103 = pneg %p102
    $region15: #{simplex_dense.1} parent=1 // pred_check_branch
      %105 = sbr.rel (%p103) target = $region17
    $region16: #{simplex_dense.1} parent=1 // pred_region
      %106 = vst [vmem:[#allocation2] sm:$0xff] %v99
    $region17: #{simplex_dense.1} parent=1 // pred_fallthru
      _
    %p107 = scmp.gt.s32.totalorder 0, 0
    // Predicated region
    $region18: #{simplex_dense.1} parent=1 // pred_check
      %p108 = pneg %p107
    $region19: #{simplex_dense.1} parent=1 // pred_check_branch
      %110 = sbr.rel (%p108) target = $region21
    $region20: #{simplex_dense.1} parent=1 // pred_region
      %v111 = vld [vmem:[#allocation2] sm:$0xff]
      %v112 = vadd.f32 %v111, %v99
      %113 = vst [vmem:[#allocation2] sm:$0xff] %v112
    $region21: #{simplex_dense.1} parent=1 // pred_fallthru
      _
    // Predicated region
    $region22: #{simplex_dense.1} parent=1 // pred_check
      %p114 = pneg %p102
    $region23: #{simplex_dense.1} parent=1 // pred_check_branch
      %116 = sbr.rel (%p114) target = $region25
    $region24: #{simplex_dense.1} parent=1 // pred_region
      %v117 = vld [vmem:[%s0] sm:$0xff]
      %v118 = vmul.f32 %v117, 0.8
      %v119 = vld [vmem:[#allocation2] sm:$0xff]
      %v120 = vmul.f32 %v119, 0.2
      %v121 = vadd.f32 %v118, %v120
      %122 = vst [vmem:[#allocation2] sm:$0xff] %v121
    $region25: #{simplex_dense.1} parent=1 // pred_fallthru
      _
    // Predicated region
    $region26: #{simplex_dense.1} parent=1 // pred_check
      _
    $region27: #{simplex_dense.1} parent=1 // pred_check_branch
      %124 = sbr.rel (0) target = $region29
    $region28: #{simplex_dense.1} parent=1 // pred_region
      %s126 = ssub.s32 128, 128
      %127 = vsyncadd [#allocation3], %s126
      %s129 = sshll.u32 [#allocation2], 4
      %s130 = int_to_ptr.vmem [resolvable:$true] %s129
      %132 = dma.vmem_to_hbm [thread:$0]  %s130, 128, %s3, [#allocation3]
    $region29: #{simplex_dense.1} parent=1 // pred_fallthru
      _
    // Predicated region
    $region30: #{simplex_dense.1} parent=1 // pred_check
      _
    $region31: #{simplex_dense.1} parent=1 // pred_check_branch
      %134 = sbr.rel (0) target = $region33
    $region32: #{simplex_dense.1} parent=1 // pred_region
      %135 = dma.done [#allocation3], 128
    $region33: #{simplex_dense.1} parent=1 // pred_fallthru
      _
    %136 = vsyncpa [#allocation3], 1

</llo_original>
